<compile_context>
chip_gen: v7x
topology: tpu7x:2x2x1
jax: 0.10.0
libtpu: 0.0.40
codegen_flags: <defaults>
</compile_context>

<pallas_src>
import numpy as np
import jax
import jax.numpy as jnp
from jax.experimental import pallas as pl
from jax.experimental.pallas import tpu as pltpu

_LANE = 128
_SUBLANE = 8
_MIB = 1024 * 1024


def _round_up(x: int, m: int) -> int:
    return ((x + m - 1) // m) * m


def _linear_kernel(x_ref, w_ref, b_ref, o_ref, acc_ref):
    # x_ref  : (tm, nt)      input row tile (compute dtype)
    # w_ref  : (nt, k_pad)   pre-transposed weight chunk (compute dtype)
    # b_ref  : (1, k_pad)    bias row, f32
    # o_ref  : (tm, k_pad)   lane-dense output tile
    # acc_ref: (tm, k_pad)   f32 accumulator scratch (contraction axis = grid 1)
    @pl.when(pl.program_id(1) == 0)
    def _():
        acc_ref[...] = jnp.zeros_like(acc_ref)

    acc_ref[...] += jnp.dot(x_ref[...], w_ref[...],
                            preferred_element_type=jnp.float32)

    @pl.when(pl.program_id(1) == pl.num_programs(1) - 1)
    def _():
        o_ref[...] = (acc_ref[...] + b_ref[...]).astype(o_ref.dtype)


def _vmem_budget_and_limit():
    """Generation-aware VMEM tile budget and matching compiler limit."""
    try:
        info = pltpu.get_tpu_info()
        cap = int(getattr(info, "vmem_capacity_bytes", 0)) or 64 * _MIB
    except Exception:  # interpret mode / unknown device
        cap = 64 * _MIB
    budget = min(int(cap * 0.45), 60 * _MIB)     # ~57 MiB on 128-MiB parts, ~28 MiB on v7x
    limit = min(budget + 8 * _MIB, cap - 4 * _MIB)
    return budget, int(limit)


def _choose_tiles(M_pad: int, n: int, k_pad: int, in_sz: int, out_sz: int,
                  budget: int):
    """Pick (tm rows, nt contraction chunk, weight buffer count) for the budget."""
    target_tm = min(1024, M_pad)                 # diminishing returns past ~1k rows

    def tm_for(nt: int, w_bufs: int) -> int:
        fixed = w_bufs * nt * k_pad * in_sz + k_pad * 4          # weight + f32 bias
        per_row = 2 * nt * in_sz + 2 * k_pad * out_sz + k_pad * 4  # x/out (2 bufs) + acc
        avail = budget - fixed
        return 0 if avail <= 0 else avail // per_row

    # 1) Whole contraction resident: single k-step, weight single-buffered.
    tm = tm_for(n, 1)
    if tm >= min(512, M_pad) or n <= _LANE:
        nt, w_bufs = n, 1
    else:
        # 2) Stream the contraction (v7x / large n): chunk changes per step
        #    -> double-buffer the weight chunk, keep a large row tile.
        nt, w_bufs = _LANE, 2
        for cand in (4096, 2048, 1024, 512, 256, 128):
            if cand <= _round_up(n, _LANE) and tm_for(cand, 2) >= min(512, M_pad):
                nt = cand
                break
        tm = tm_for(nt, 2)

    tm = max(_SUBLANE, min(tm, target_tm))
    tm = (tm // _SUBLANE) * _SUBLANE
    return tm, nt, w_bufs


def projection_forward(x: jax.Array, weight: jax.Array, bias: jax.Array,
                       *, compute_dtype=None, out_dtype=None) -> jax.Array:
    """Equivalent of nn.Linear(n, k): y = x @ weight.T + bias.

    x      : (..., n)
    weight : (k, n)   (PyTorch nn.Linear convention)
    bias   : (k,)
    compute_dtype : dtype for x / weight tiles (bf16 recommended for real
                    Linformer shapes; accumulation is always f32)
    out_dtype     : output dtype (defaults to x.dtype)
    """
    *lead, n = x.shape
    k = weight.shape[0]
    assert weight.shape == (k, n)
    assert bias.shape == (k,)

    compute_dtype = jnp.dtype(compute_dtype if compute_dtype is not None else x.dtype)
    out_dtype = jnp.dtype(out_dtype if out_dtype is not None else x.dtype)

    M = int(np.prod(lead)) if lead else 1
    if M == 0:  # degenerate empty-batch guard
        return jnp.zeros((*lead, k), dtype=out_dtype)

    k_pad = _round_up(k, _LANE)       # lane-dense output: unmasked 128-lane stores
    M_pad = _round_up(M, _SUBLANE)

    in_sz = compute_dtype.itemsize
    out_sz = out_dtype.itemsize
    budget, vmem_limit = _vmem_budget_and_limit()
    tm, nt, w_bufs = _choose_tiles(M_pad, n, k_pad, in_sz, out_sz, budget)

    # Engage both TensorCores (v7x) whenever the row grid would be a single
    # program; on 1-TC chips this just adds one cheap grid step.
    if pl.cdiv(M_pad, tm) == 1 and M_pad >= 4 * _SUBLANE:
        tm = max(_SUBLANE, _round_up(pl.cdiv(M_pad, 2), _SUBLANE))

    n_pad = n if nt == n else _round_up(n, nt)
    ksteps = max(1, n_pad // nt)

    # TODO(synk): hoist this transpose / zero-pad to parameter-init time in a
    # real model (it is a tiny one-time op here). Zero-padded rows/columns
    # contribute nothing to the dot product, so semantics are exact.
    w_t = weight.astype(compute_dtype).T                       # (n, k)
    if k_pad != k or n_pad != n:
        w_t = jnp.pad(w_t, ((0, n_pad - n), (0, k_pad - k)))
    b2 = jnp.pad(bias.astype(jnp.float32), (0, k_pad - k)).reshape(1, k_pad)

    x2 = x.reshape(M, n).astype(compute_dtype)
    if M_pad != M or n_pad != n:
        x2 = jnp.pad(x2, ((0, M_pad - M), (0, n_pad - n)))

    grid = (pl.cdiv(M_pad, tm), ksteps)          # reduction axis last

    cost = pl.CostEstimate(
        flops=2 * M_pad * n_pad * k_pad,
        transcendentals=0,
        bytes_accessed=(M_pad * n_pad * in_sz + n_pad * k_pad * in_sz
                        + M_pad * k_pad * out_sz + k_pad * 4),
    )

    out2 = pl.pallas_call(
        _linear_kernel,
        out_shape=jax.ShapeDtypeStruct((M_pad, k_pad), out_dtype),
        grid_spec=pltpu.PrefetchScalarGridSpec(
            num_scalar_prefetch=0,
            grid=grid,
            in_specs=[
                pl.BlockSpec((tm, nt), lambda i, j: (i, j)),             # x tile
                pl.BlockSpec((nt, k_pad), lambda i, j: (j, 0),           # W^T chunk
                             pipeline_mode=pl.Buffered(w_bufs)),
                pl.BlockSpec((1, k_pad), lambda i, j: (0, 0),            # bias (resident)
                             pipeline_mode=pl.Buffered(1)),
            ],
            out_specs=pl.BlockSpec((tm, k_pad), lambda i, j: (i, 0)),
            scratch_shapes=[pltpu.VMEM((tm, k_pad), jnp.float32)],
        ),
        compiler_params=pltpu.CompilerParams(
            dimension_semantics=("parallel", "arbitrary"),
            vmem_limit_bytes=vmem_limit,
        ),
        cost_estimate=cost,
    )(x2, w_t, b2)

    out2 = out2[:M, :k]
    return out2.reshape(*lead, k).astype(out_dtype)


if __name__ == "__main__":
    # Module config: Projection(n=64, k=16); Linformer-style input (batch, d, n).
    # NOTE: at these harness shapes the contraction (n=64) only half-fills the
    # MXU; real Linformer shapes should keep n (and k) multiples of 128/256.
    n, k = 64, 16
    batch, d = 2, 32

    key = jax.random.PRNGKey(0)
    kx, kw, kb = jax.random.split(key, 3)

    # Deterministic synthetic parameters (nn.Linear shapes: W (k, n), b (k,)).
    bound = 1.0 / np.sqrt(n)
    weight = jax.random.uniform(kw, (k, n), jnp.float32, minval=-bound, maxval=bound)
    bias = jax.random.uniform(kb, (k,), jnp.float32, minval=-bound, maxval=bound)

    x = jax.random.normal(kx, (batch, d, n), jnp.float32)

    y_ref = x @ weight.T + bias

    # Exact f32 datapath.
    y = jax.block_until_ready(projection_forward(x, weight, bias))
    assert y.shape == (batch, d, k)
    np.testing.assert_allclose(np.asarray(y), np.asarray(y_ref), rtol=1e-5, atol=1e-5)

    # Production bf16 datapath (halved HBM traffic, native bf16 MXU; f32 accumulation).
    y_bf16 = jax.block_until_ready(
        projection_forward(x, weight, bias, compute_dtype=jnp.bfloat16))
    assert y_bf16.shape == (batch, d, k)
    np.testing.assert_allclose(np.asarray(y_bf16), np.asarray(y_ref), rtol=2e-2, atol=2e-2)

    print("KERNEL_OK")
</pallas_src>

<mosaic_0001>
module attributes {stable_mosaic.version = 11 : i64} {
  func.func @_linear_kernel(%arg0: i32, %arg1: i32, %arg2: memref<32x64xf32, #tpu.memory_space<vmem>>, %arg3: memref<64x128xf32, #tpu.memory_space<vmem>>, %arg4: memref<1x128xf32, #tpu.memory_space<vmem>>, %arg5: memref<32x128xf32, #tpu.memory_space<vmem>>, %arg6: memref<32x128xf32, #tpu.memory_space<vmem>>) attributes {dimension_semantics = [#tpu.dimension_semantics<parallel>, #tpu.dimension_semantics<arbitrary>], iteration_bounds = array<i64: 2, 1>, scalar_prefetch = 0 : i64, scratch_operands = 1 : i64, tpu.core_type = #tpu.core_type<tc>, window_params = [{transform_indices = @transform_0, window_bounds = array<i64: 32, 64>}, {pipeline_mode = #tpu.pipeline_mode<synchronous>, transform_indices = @transform_1, window_bounds = array<i64: 64, 128>}, {pipeline_mode = #tpu.pipeline_mode<synchronous>, transform_indices = @transform_2, window_bounds = array<i64: 1, 128>}, {transform_indices = @transform_3, window_bounds = array<i64: 32, 128>}]} {
    %c0_i32 = arith.constant 0 : i32
    %0 = arith.cmpi eq, %arg1, %c0_i32 : i32
    %1 = arith.extui %0 : i1 to i32
    %c0_i32_0 = arith.constant 0 : i32
    %2 = arith.cmpi ne, %1, %c0_i32_0 : i32
    scf.if %2 {
      %cst_10 = arith.constant 0.000000e+00 : f32
      %12 = vector.broadcast %cst_10 : f32 to vector<32x128xf32>
      %c0_11 = arith.constant 0 : index
      %c0_12 = arith.constant 0 : index
      %13 = vector.load %arg6[%c0_11, %c0_12] : memref<32x128xf32, #tpu.memory_space<vmem>>, vector<32x128xf32>
      tpu.vector_store %arg6[%c0_11, %c0_12], %12 {strides = array<i32>} : memref<32x128xf32, #tpu.memory_space<vmem>>, vector<32x128xf32>,
    } else {
    }
    %c0 = arith.constant 0 : index
    %c0_1 = arith.constant 0 : index
    %3 = vector.load %arg6[%c0, %c0_1] : memref<32x128xf32, #tpu.memory_space<vmem>>, vector<32x128xf32>
    %c0_2 = arith.constant 0 : index
    %c0_3 = arith.constant 0 : index
    %4 = vector.load %arg2[%c0_2, %c0_3] : memref<32x64xf32, #tpu.memory_space<vmem>>, vector<32x64xf32>
    %c0_4 = arith.constant 0 : index
    %c0_5 = arith.constant 0 : index
    %5 = vector.load %arg3[%c0_4, %c0_5] : memref<64x128xf32, #tpu.memory_space<vmem>>, vector<64x128xf32>
    %cst = arith.constant dense<0.000000e+00> : vector<32x128xf32>
    %6 = tpu.matmul %4, %5, %cst {dimension_numbers = #tpu.dot_dimension_numbers<[1], [0], [0], [1], [0, 0, 1, 1], [], []>} : vector<32x64xf32>, vector<64x128xf32>, vector<32x128xf32> -> vector<32x128xf32>
    %7 = arith.addf %3, %6 : vector<32x128xf32>
    %c0_6 = arith.constant 0 : index
    %c0_7 = arith.constant 0 : index
    %8 = vector.load %arg6[%c0_6, %c0_7] : memref<32x128xf32, #tpu.memory_space<vmem>>, vector<32x128xf32>
    tpu.vector_store %arg6[%c0_6, %c0_7], %7 {strides = array<i32>} : memref<32x128xf32, #tpu.memory_space<vmem>>, vector<32x128xf32>,
    %c0_i32_8 = arith.constant 0 : i32
    %9 = arith.cmpi eq, %arg1, %c0_i32_8 : i32
    %10 = arith.extui %9 : i1 to i32
    %c0_i32_9 = arith.constant 0 : i32
    %11 = arith.cmpi ne, %10, %c0_i32_9 : i32
    scf.if %11 {
      %c0_10 = arith.constant 0 : index
      %c0_11 = arith.constant 0 : index
      %12 = vector.load %arg6[%c0_10, %c0_11] : memref<32x128xf32, #tpu.memory_space<vmem>>, vector<32x128xf32>
      %c0_12 = arith.constant 0 : index
      %c0_13 = arith.constant 0 : index
      %13 = vector.load %arg4[%c0_12, %c0_13] : memref<1x128xf32, #tpu.memory_space<vmem>>, vector<1x128xf32>
      %14 = vector.broadcast %13 : vector<1x128xf32> to vector<32x128xf32>
      %15 = arith.addf %12, %14 : vector<32x128xf32>
      %c0_14 = arith.constant 0 : index
      %c0_15 = arith.constant 0 : index
      %16 = vector.load %arg5[%c0_14, %c0_15] : memref<32x128xf32, #tpu.memory_space<vmem>>, vector<32x128xf32>
      tpu.vector_store %arg5[%c0_14, %c0_15], %15 {strides = array<i32>} : memref<32x128xf32, #tpu.memory_space<vmem>>, vector<32x128xf32>,
    } else {
    }
    return
  }
  func.func @transform_0(%arg0: i32, %arg1: i32) -> (i32, i32) {
    %c0_i32 = arith.constant 0 : i32
    return %arg0, %arg1 : i32, i32
  }
  func.func @transform_1(%arg0: i32, %arg1: i32) -> (i32, i32) {
    %c0_i32 = arith.constant 0 : i32
    %c0_i32_0 = arith.constant 0 : i32
    return %arg1, %c0_i32 : i32, i32
  }
  func.func @transform_2(%arg0: i32, %arg1: i32) -> (i32, i32) {
    %c0_i32 = arith.constant 0 : i32
    %c0_i32_0 = arith.constant 0 : i32
    %c0_i32_1 = arith.constant 0 : i32
    return %c0_i32, %c0_i32_0 : i32, i32
  }
  func.func @transform_3(%arg0: i32, %arg1: i32) -> (i32, i32) {
    %c0_i32 = arith.constant 0 : i32
    %c0_i32_0 = arith.constant 0 : i32
    return %arg0, %c0_i32 : i32, i32
  }
}

</mosaic_0001>

<llo_original>
// kernel: tpu_custom_call.1
$region0: #{tpu_custom_call.1}
  #allocation0 [shape = 'u32[]', space=smem, size = 0x4, offset = 0x4, fixed_abs, tag = 'smem constant byte address 0x4 - core index']
  #allocation1 [shape = 'u32[144,128]{1,0:T(1,128)}', space=vmem, size = 0x12000, scoped, tag = 'internal scratch']
  #allocation2 [shape = 'f32[32,128]{1,0:T(8,128)}', space=vmem, size = 0x4000, scoped, tag = 'scratch operand']
  %s0 = inlined_call_operand.hbm [shape: f32[64,64], index: 0, kind: input, shape index: {}]
  %s1 = inlined_call_operand.hbm [shape: f32[64,128], index: 1, kind: input, shape index: {}]
  %s2 = inlined_call_operand.vmem [shape: f32[1,128], index: 2, kind: input, shape index: {}]
  %s3 = inlined_call_operand.hbm [shape: f32[64,128], index: 3, kind: output, shape index: {}]
  %s4 = sld [smem:[#allocation0]]
  $region61: #{tpu_custom_call.1} parent=0
    _
  %s6 = ssub.s32 1, %s4
  %s7 = scalar_select 0, %s6, %s4
  $region1: #{tpu_custom_call.1} parent=0
    #allocation3 [shape = 'u8[32768]{0}', space=vmem, size = 0x8000, scoped, tag = 'input window, operand 0']
    #allocation4 [shape = 's32[2]{0}', space=sflag, size = 0x8, scoped, tag = 'scoped memory for tpu_custom_call.1']
    #allocation5 [shape = 's32[2]{0}', space=sflag, size = 0x8, scoped, tag = 'scoped memory for tpu_custom_call.1']
    #allocation6 [shape = 'u8[32768]{0}', space=vmem, size = 0x8000, scoped, tag = 'input window, operand 1, single buffered']
    #allocation7 [shape = 's32[1]{0}', space=sflag, size = 0x4, scoped, tag = 'scoped memory for tpu_custom_call.1']
    #allocation8 [shape = 'u8[32768]{0}', space=vmem, size = 0x8000, scoped, tag = 'output window, operand 0']
    %8 = vsyncpa [#allocation4], 0
    %s9 = scalar_lea.sflag [#allocation4], 1
    %10 = vsyncpa %s9, 0
    %11 = vsyncpa [#allocation7], 0
    %12 = vsyncpa [#allocation5], 0
    %s13 = scalar_lea.sflag [#allocation5], 1
    %14 = vsyncpa %s13, 0
    loop: start=0, step=1, limit=4
    $region2: #{tpu_custom_call.1} parent=1 // loop_pre_header
      _
    $region3: #{tpu_custom_call.1} parent=1 // loop_header
      %s16 = sphi 0, %s20
      %p17 = scmp.ge.s32.totalorder %s16, 4
      %s23 = sphi 0, %s35
      %s24 = sphi 0, %s31
      %s25 = sphi 0, %s23
      %s26 = sphi 0, %s24
      %s27 = sphi 0, %s25
      %s28 = sphi 0, %s26
      %s40 = sphi 0, %s42
      %s43 = sphi 0, %s40
      %s44 = sphi 0, %s43
      %s60 = sphi 0, %s44
      %s66 = sphi 0, %s68
      %s69 = sphi 0, %s66
      %s70 = sphi 0, %s69
      %s86 = sphi 0, %s70
      %s90 = sphi 0, %s90
      %s92 = sphi 0, %s90
      %s93 = sphi 0, %s92
      %s107 = sphi 0, %s93
      %s113 = sphi 0, %s115
      %s116 = sphi 0, %s113
      %s117 = sphi 0, %s116
      %s133 = sphi 0, %s117
    $region4: #{tpu_custom_call.1} parent=1 // loop_header_branch
      %19 = sbr.rel (%p17) target = $region8
    $region5: #{tpu_custom_call.1} parent=1 // loop_body
      %s21 = ssub.s32 %s16, 1
      %s22 = ssub.s32 %s16, 2
      %s29 = sadd.s32 1, %s24
      %p30 = scmp.ge.s32.totalorder %s29, 1
      %s31 = scalar_select %p30, 0, %s29
      %s32 = sadd.s32 1, %s23
      %s33 = scalar_select %p30, %s32, %s23
      %p34 = scmp.ge.s32.totalorder %s33, 2
      %s35 = scalar_select %p34, 0, %s33
      %s36 = ssub.s32 %s23, %s35
      %s37 = ssub.s32 %s24, %s31
      %s38 = sor.u32 %s36, %s37
      %p39 = scmp.eq.s32.totalorder %s38, 0
      %s41 = sadd.s32 %s40, 1
      %s42 = scalar_select %p39, %s40, %s41
      %p45 = pneg %p39
      %p46 = scmp.eq.s32.totalorder %s16, 1
      %p47 = por %p45, %p46
      %p48 = scmp.ne.s32.totalorder %s40, %s43
      %p49 = scmp.eq.s32.totalorder %s16, 0
      %p50 = por %p48, %p49
      %p51 = scmp.ne.s32.totalorder %s40, %s43
      %p52 = scmp.eq.s32.totalorder %s21, 1
      %p53 = por %p51, %p52
      %p54 = scmp.ne.s32.totalorder %s43, %s44
      %p55 = scmp.eq.s32.totalorder %s21, 0
      %p56 = por %p54, %p55
      %p57 = scmp.ne.s32.totalorder %s43, %s44
      %p58 = scmp.eq.s32.totalorder %s22, 1
      %p59 = por %p57, %p58
      %p61 = scmp.ne.s32.totalorder %s44, %s60
      %p62 = scmp.eq.s32.totalorder %s22, 0
      %p63 = por %p61, %p62
      %s64 = ssub.s32 %s24, %s31
      %p65 = scmp.eq.s32.totalorder %s64, 0
      %s67 = sadd.s32 %s66, 1
      %s68 = scalar_select %p65, %s66, %s67
      %p71 = pneg %p65
      %p72 = scmp.eq.s32.totalorder %s16, 1
      %p73 = por %p71, %p72
      %p74 = scmp.ne.s32.totalorder %s66, %s69
      %p75 = scmp.eq.s32.totalorder %s16, 0
      %p76 = por %p74, %p75
      %p77 = scmp.ne.s32.totalorder %s66, %s69
      %p78 = scmp.eq.s32.totalorder %s21, 1
      %p79 = por %p77, %p78
      %p80 = scmp.ne.s32.totalorder %s69, %s70
      %p81 = scmp.eq.s32.totalorder %s21, 0
      %p82 = por %p80, %p81
      %p83 = scmp.ne.s32.totalorder %s69, %s70
      %p84 = scmp.eq.s32.totalorder %s22, 1
      %p85 = por %p83, %p84
      %p87 = scmp.ne.s32.totalorder %s70, %s86
      %p88 = scmp.eq.s32.totalorder %s22, 0
      %p89 = por %p87, %p88
      %s91 = sadd.s32 %s90, 1
      %p94 = scmp.eq.s32.totalorder %s16, 1
      %p95 = scmp.ne.s32.totalorder %s90, %s92
      %p96 = scmp.eq.s32.totalorder %s16, 0
      %p97 = por %p95, %p96
      %p98 = scmp.ne.s32.totalorder %s90, %s92
      %p99 = scmp.eq.s32.totalorder %s21, 1
      %p100 = por %p98, %p99
      %p101 = scmp.ne.s32.totalorder %s92, %s93
      %p102 = scmp.eq.s32.totalorder %s21, 0
      %p103 = por %p101, %p102
      %p104 = scmp.ne.s32.totalorder %s92, %s93
      %p105 = scmp.eq.s32.totalorder %s22, 1
      %p106 = por %p104, %p105
      %p108 = scmp.ne.s32.totalorder %s93, %s107
      %p109 = scmp.eq.s32.totalorder %s22, 0
      %p110 = por %p108, %p109
      %s111 = ssub.s32 %s23, %s35
      %p112 = scmp.eq.s32.totalorder %s111, 0
      %s114 = sadd.s32 %s113, 1
      %s115 = scalar_select %p112, %s113, %s114
      %p118 = pneg %p112
      %p119 = scmp.eq.s32.totalorder %s16, 1
      %p120 = por %p118, %p119
      %p121 = scmp.ne.s32.totalorder %s113, %s116
      %p122 = scmp.eq.s32.totalorder %s16, 0
      %p123 = por %p121, %p122
      %p124 = scmp.ne.s32.totalorder %s113, %s116
      %p125 = scmp.eq.s32.totalorder %s21, 1
      %p126 = por %p124, %p125
      %p127 = scmp.ne.s32.totalorder %s116, %s117
      %p128 = scmp.eq.s32.totalorder %s21, 0
      %p129 = por %p127, %p128
      %p130 = scmp.ne.s32.totalorder %s116, %s117
      %p131 = scmp.eq.s32.totalorder %s22, 1
      %p132 = por %p130, %p131
      %p134 = scmp.ne.s32.totalorder %s117, %s133
      %p135 = scmp.eq.s32.totalorder %s22, 0
      %p136 = por %p134, %p135
      %p137 = scmp.le.s32.totalorder 1, %s16
      %p138 = scmp.lt.s32.totalorder %s16, 3
      %p139 = pnand %p137, %p138
      %p140 = pneg %p139
      // Predicated region
      $region9: #{tpu_custom_call.1} parent=5 // pred_check
        _
      $region10: #{tpu_custom_call.1} parent=5 // pred_check_branch
        %142 = sbr.rel (%p139) target = $region12
      $region11: #{tpu_custom_call.1} parent=5 // pred_region
        %s143 = ssub.s32 %s16, 1
        // Predicated region
        $region13: #{tpu_custom_call.1} parent=11 // pred_check
          %p144 = pneg %p82
        $region14: #{tpu_custom_call.1} parent=11 // pred_check_branch
          %146 = sbr.rel (%p144) target = $region16
        $region15: #{tpu_custom_call.1} parent=11 // pred_region
          %s147 = smul.u32 8, %s26
          %s149 = ssub.s32 1024, 1024
          %150 = vsyncadd [#allocation7], %s149
          %s151 = smul.addr %s147, 128
          %s152 = scalar_lea.hbm %s1, %s151
          %s153 = sshll.u32 [#allocation6], 4
          %s154 = int_to_ptr.vmem [resolvable:$true] %s153
          %159 = dma.hbm_to_vmem [thread:$0]  %s152, 1024, %s154, [#allocation7], 128, 128, 8
        $region16: #{tpu_custom_call.1} parent=11 // pred_fallthru
          _
        // Predicated region
        $region17: #{tpu_custom_call.1} parent=11 // pred_check
          %p160 = pneg %p103
        $region18: #{tpu_custom_call.1} parent=11 // pred_check_branch
          %162 = sbr.rel (%p160) target = $region20
        $region19: #{tpu_custom_call.1} parent=11 // pred_region
          _
        $region20: #{tpu_custom_call.1} parent=11 // pred_fallthru
          _
      $region12: #{tpu_custom_call.1} parent=5 // pred_fallthru
        _
      %p163 = scmp.lt.s32.totalorder %s16, 2
      // Predicated region
      $region21: #{tpu_custom_call.1} parent=5 // pred_check
        %p164 = pneg %p163
      $region22: #{tpu_custom_call.1} parent=5 // pred_check_branch
        %166 = sbr.rel (%p164) target = $region24
      $region23: #{tpu_custom_call.1} parent=5 // pred_region
        // Predicated region
        $region25: #{tpu_custom_call.1} parent=23 // pred_check
          %p167 = pneg %p50
        $region26: #{tpu_custom_call.1} parent=23 // pred_check_branch
          %169 = sbr.rel (%p167) target = $region28
        $region27: #{tpu_custom_call.1} parent=23 // pred_region
          %s170 = sand.u32 %s40, 1
          %s171 = scalar_lea.sflag [#allocation4], %s170
          %s172 = sand.u32 %s40, 1
          %s173 = smul.addr %s172, 32
          %s174 = scalar_lea.vmem [#allocation3], %s173
          %s175 = smul.u32 4, %s23
          %s177 = ssub.s32 512, 512
          %178 = vsyncadd %s171, %s177
          %s179 = sadd.s32 %s24, %s175
          %s180 = smul.addr %s179, 128
          %s181 = scalar_lea.hbm %s0, %s180
          %s182 = sshll.u32 %s174, 4
          %s183 = int_to_ptr.vmem [resolvable:$true] %s182
          %188 = dma.hbm_to_vmem [thread:$0]  %s181, 512, %s183, %s171, 128, 128, 8
        $region28: #{tpu_custom_call.1} parent=23 // pred_fallthru
          _
      $region24: #{tpu_custom_call.1} parent=5 // pred_fallthru
        _
      %p189 = scmp.le.s32.totalorder 1, %s16
      %p190 = scmp.lt.s32.totalorder %s16, 3
      %p191 = pnand %p189, %p190
      %p192 = pneg %p191
      // Predicated region
      $region29: #{tpu_custom_call.1} parent=5 // pred_check
        _
      $region30: #{tpu_custom_call.1} parent=5 // pred_check_branch
        %194 = sbr.rel (%p191) target = $region32
      $region31: #{tpu_custom_call.1} parent=5 // pred_region
        %s195 = ssub.s32 %s16, 1
        %s196 = sand.u32 %s43, 1
        %s197 = scalar_lea.sflag [#allocation4], %s196
        %s198 = sand.u32 %s43, 1
        %s199 = smul.addr %s198, 32
        %s200 = scalar_lea.vmem [#allocation3], %s199
        // Predicated region
        $region33: #{tpu_custom_call.1} parent=31 // pred_check
          %p201 = pneg %p56
        $region34: #{tpu_custom_call.1} parent=31 // pred_check_branch
          %203 = sbr.rel (%p201) target = $region36
        $region35: #{tpu_custom_call.1} parent=31 // pred_region
          %204 = dma.done %s197, 512
        $region36: #{tpu_custom_call.1} parent=31 // pred_fallthru
          _
        // Predicated region
        $region37: #{tpu_custom_call.1} parent=31 // pred_check
          %p205 = pneg %p82
        $region38: #{tpu_custom_call.1} parent=31 // pred_check_branch
          %207 = sbr.rel (%p205) target = $region40
        $region39: #{tpu_custom_call.1} parent=31 // pred_region
          %208 = dma.done [#allocation7], 1024
        $region40: #{tpu_custom_call.1} parent=31 // pred_fallthru
          _
        %s209 = sand.u32 %s43, 1
        %s210 = scalar_lea.sflag [#allocation4], %s209
        %s211 = sand.u32 %s43, 1
        %s212 = smul.addr %s211, 32
        %s213 = scalar_lea.vmem [#allocation3], %s212
        %p214 = pneg %p56
        %p215 = pneg %p53
        %p216 = pneg %p82
        %p217 = pneg %p79
        %p218 = pneg %p103
        %p219 = pneg %p100
        %p220 = pneg %p129
        %p221 = pneg %p126
        %s222 = sand.u32 %s116, 1
        %s223 = scalar_lea.sflag [#allocation5], %s222
        %s224 = sand.u32 %s116, 1
        %s225 = smul.addr %s224, 32
        %s226 = scalar_lea.vmem [#allocation8], %s225
        %s227 = smul.u32 4, %s25
        %s228 = smul.u32 8, %s26
        %s229 = smul.u32 4, %s25
        %p230 = scmp.eq.s32.totalorder %s26, 0
        // Predicated region
        $region41: #{tpu_custom_call.1} parent=31 // pred_check
          %p231 = pneg %p230
        $region42: #{tpu_custom_call.1} parent=31 // pred_check_branch
          %233 = sbr.rel (%p231) target = $region44
        $region43: #{tpu_custom_call.1} parent=31 // pred_region
          %234 = vst [vmem:[#allocation2] sm:$0xff] 0.0
          %235 = vst [vmem:[#allocation2 + $0x8] sm:$0xff] 0.0
          %236 = vst [vmem:[#allocation2 + $0x10] sm:$0xff] 0.0
          %237 = vst [vmem:[#allocation2 + $0x18] sm:$0xff] 0.0
        $region44: #{tpu_custom_call.1} parent=31 // pred_fallthru
          _
        %v238 = vld [vmem:[#allocation2] sm:$0xff]
        %v239 = vld [vmem:[#allocation2 + $0x8] sm:$0xff]
        %v240 = vld [vmem:[#allocation2 + $0x10] sm:$0xff]
        %v241 = vld [vmem:[#allocation2 + $0x18] sm:$0xff]
        %v242 = vld [vmem:[%s200] sm:$0xff]
        %v243 = vld [vmem:[%s200 + $0x8] sm:$0xff]
        %v244 = vld [vmem:[%s200 + $0x10] sm:$0xff]
        %v245 = vld [vmem:[%s200 + $0x18] sm:$0xff]
        %v246 = vld [vmem:[#allocation6] sm:$0xff]
        %v247 = vld [vmem:[#allocation6 + $0x8] sm:$0xff]
        %v248 = vld [vmem:[#allocation6 + $0x10] sm:$0xff]
        %v249 = vld [vmem:[#allocation6 + $0x18] sm:$0xff]
        %v250 = vld [vmem:[#allocation6 + $0x20] sm:$0xff]
        %v251 = vld [vmem:[#allocation6 + $0x28] sm:$0xff]
        %v252 = vld [vmem:[#allocation6 + $0x30] sm:$0xff]
        %v253 = vld [vmem:[#allocation6 + $0x38] sm:$0xff]
        %vm254 = vcmask 523264
        %v256 = vsel %vm254, %v242, 0
        %v259 = vsel %vm254, %v243, 0
        %v262 = vsel %vm254, %v244, 0
        %v265 = vsel %vm254, %v245, 0
        %267 = vmatprep.subr.mxu0 0.0
        %268 = vmatpush1.msra.mxu0 %v246
        %269 = vmatprep.subr.mxu0 0.0
        %270 = vmatpush1.msra.mxu0 %v247
        %271 = vmatprep.subr.mxu0 0.0
        %272 = vmatpush1.msra.mxu0 %v248
        %273 = vmatprep.subr.mxu0 0.0
        %274 = vmatpush1.msra.mxu0 %v249
        %275 = vmatprep.subr.mxu0 0.0
        %276 = vmatpush1.msra.mxu0 %v250
        %277 = vmatprep.subr.mxu0 0.0
        %278 = vmatpush1.msra.mxu0 %v251
        %279 = vmatprep.subr.mxu0 0.0
        %280 = vmatpush1.msra.mxu0 %v252
        %281 = vmatprep.subr.mxu0 0.0
        %282 = vmatpush1.msra.mxu0 %v253
        %283 = vmatprep.subr.mxu0 0.0
        %284 = vmatpush1.msra.mxu0 0.0
        %285 = vmatprep.subr.mxu0 0.0
        %286 = vmatpush1.msra.mxu0 0.0
        %287 = vmatprep.subr.mxu0 0.0
        %288 = vmatpush1.msra.mxu0 0.0
        %289 = vmatprep.subr.mxu0 0.0
        %290 = vmatpush1.msra.mxu0 0.0
        %291 = vmatprep.subr.mxu0 0.0
        %292 = vmatpush1.msra.mxu0 0.0
        %293 = vmatprep.subr.mxu0 0.0
        %294 = vmatpush1.msra.mxu0 0.0
        %295 = vmatprep.subr.mxu0 0.0
        %296 = vmatpush1.msra.mxu0 0.0
        %297 = vmatprep.subr.mxu0 0.0
        %298 = vmatpush1.msra.mxu0 0.0
        %299 = vmatprep.subr.mxu0 0.0
        %300 = vmatpush1.msra.mxu0 0.0
        %301 = vmatprep.subr.mxu0 0.0
        %302 = vmatpush1.msra.mxu0 0.0
        %303 = vmatprep.subr.mxu0 0.0
        %304 = vmatpush1.msra.mxu0 0.0
        %305 = vmatprep.subr.mxu0 0.0
        %306 = vmatpush1.msra.mxu0 0.0
        %307 = vmatprep.subr.mxu0 0.0
        %308 = vmatpush1.msra.mxu0 0.0
        %309 = vmatprep.subr.mxu0 0.0
        %310 = vmatpush1.msra.mxu0 0.0
        %311 = vmatprep.subr.mxu0 0.0
        %312 = vmatpush1.msra.mxu0 0.0
        %313 = vmatprep.subr.mxu0 0.0
        %314 = vmatpush1.msra.mxu0 0.0
        %315 = vmatprep.subr.mxu0 0.0
        %316 = vmatpush1.msra.mxu0 0.0
        %317 = vmatprep.subr.mxu0 0.0
        %318 = vmatpush1.msra.mxu0 0.0
        %319 = vmatprep.subr.mxu0 0.0
        %320 = vmatpush1.msra.mxu0 0.0
        %321 = vmatprep.subr.mxu0 0.0
        %322 = vmatpush1.msra.mxu0 0.0
        %323 = vmatprep.subr.mxu0 0.0
        %324 = vmatpush1.msra.mxu0 0.0
        %325 = vmatprep.subr.mxu0 0.0
        %326 = vmatpush1.msra.mxu0 0.0
        %327 = vmatprep.subr.mxu0 0.0
        %328 = vmatpush1.msra.mxu0 0.0
        %329 = vmatprep.subr.mxu0 0.0
        %330 = vmatpush1.msra.mxu0 0.0
        %331 = vmatprep.mubr.f32.mxu0 0.0
        %332 = vmatmul.mubr.f32.gmra.mrb[0].mxu0 %v256
        %v333 = vpop.f32.mrb[0].mxu0
        %v334 = vadd.f32 0.0, %v333
        %v335 = vpop.f32.mrb[0].mxu0
        %336 = vmatprep.mubr.f32.mxu0 0.0
        %337 = vmatmul.mubr.f32.gmra.mrb[0].mxu0 %v259
        %v338 = vpop.f32.mrb[0].mxu0
        %v339 = vadd.f32 0.0, %v338
        %v340 = vpop.f32.mrb[0].mxu0
        %341 = vmatprep.mubr.f32.mxu0 0.0
        %342 = vmatmul.mubr.f32.gmra.mrb[0].mxu0 %v262
        %v343 = vpop.f32.mrb[0].mxu0
        %v344 = vadd.f32 0.0, %v343
        %v345 = vpop.f32.mrb[0].mxu0
        %346 = vmatprep.mubr.f32.mxu0 0.0
        %347 = vmatmul.mubr.f32.gmra.mrb[0].mxu0 %v265
        %v348 = vpop.f32.mrb[0].mxu0
        %v349 = vadd.f32 0.0, %v348
        %v350 = vpop.f32.mrb[0].mxu0
        %351 = vdwg.mxu0
        %v352 = vadd.f32 %v238, %v334
        %v353 = vadd.f32 %v239, %v339
        %v354 = vadd.f32 %v240, %v344
        %v355 = vadd.f32 %v241, %v349
        %356 = vst [vmem:[#allocation2] sm:$0xff] %v352
        %357 = vst [vmem:[#allocation2 + $0x8] sm:$0xff] %v353
        %358 = vst [vmem:[#allocation2 + $0x10] sm:$0xff] %v354
        %359 = vst [vmem:[#allocation2 + $0x18] sm:$0xff] %v355
        // Predicated region
        $region45: #{tpu_custom_call.1} parent=31 // pred_check
          %p360 = pneg %p230
        $region46: #{tpu_custom_call.1} parent=31 // pred_check_branch
          %362 = sbr.rel (%p360) target = $region48
        $region47: #{tpu_custom_call.1} parent=31 // pred_region
          %v363 = vld [vmem:[#allocation2] sm:$0xff]
          %v364 = vld [vmem:[#allocation2 + $0x8] sm:$0xff]
          %v365 = vld [vmem:[#allocation2 + $0x10] sm:$0xff]
          %v366 = vld [vmem:[#allocation2 + $0x18] sm:$0xff]
          %v367 = vld [vmem:[%s2] sm:$0x1]
          %v369 = vlaneseq
          %v370 = vshrl.u32 %v369, 7
          %v371 = vsub.s32 0, %v370
          %v372 = vrot.slane %v367, %v371
          %v374 = vadd.f32 %v363, %v372
          %v375 = vadd.f32 %v364, %v372
          %v376 = vadd.f32 %v365, %v372
          %v377 = vadd.f32 %v366, %v372
          %378 = vst [vmem:[%s226] sm:$0xff] %v374
          %379 = vst [vmem:[%s226 + $0x8] sm:$0xff] %v375
          %380 = vst [vmem:[%s226 + $0x10] sm:$0xff] %v376
          %381 = vst [vmem:[%s226 + $0x18] sm:$0xff] %v377
        $region48: #{tpu_custom_call.1} parent=31 // pred_fallthru
          _
        %s382 = sand.u32 %s116, 1
        %s383 = scalar_lea.sflag [#allocation5], %s382
        %s384 = sand.u32 %s116, 1
        %s385 = smul.addr %s384, 32
        %s386 = scalar_lea.vmem [#allocation8], %s385
        // Predicated region
        $region49: #{tpu_custom_call.1} parent=31 // pred_check
          %p387 = pneg %p126
        $region50: #{tpu_custom_call.1} parent=31 // pred_check_branch
          %389 = sbr.rel (%p387) target = $region52
        $region51: #{tpu_custom_call.1} parent=31 // pred_region
          %s390 = smul.u32 4, %s25
          %s392 = ssub.s32 512, 512
          %393 = vsyncadd %s383, %s392
          %s394 = smul.addr %s390, 128
          %s395 = scalar_lea.hbm %s3, %s394
          %s396 = sshll.u32 %s386, 4
          %s397 = int_to_ptr.vmem [resolvable:$true] %s396
          %402 = dma.vmem_to_hbm [thread:$0]  %s397, 512, %s395, %s383, 128, 128, 8
        $region52: #{tpu_custom_call.1} parent=31 // pred_fallthru
          _
      $region32: #{tpu_custom_call.1} parent=5 // pred_fallthru
        _
      %p403 = scmp.le.s32.totalorder 2, %s16
      // Predicated region
      $region53: #{tpu_custom_call.1} parent=5 // pred_check
        %p404 = pneg %p403
      $region54: #{tpu_custom_call.1} parent=5 // pred_check_branch
        %406 = sbr.rel (%p404) target = $region56
      $region55: #{tpu_custom_call.1} parent=5 // pred_region
        %s407 = ssub.s32 %s16, 2
        // Predicated region
        $region57: #{tpu_custom_call.1} parent=55 // pred_check
          %p408 = pneg %p132
        $region58: #{tpu_custom_call.1} parent=55 // pred_check_branch
          %410 = sbr.rel (%p408) target = $region60
        $region59: #{tpu_custom_call.1} parent=55 // pred_region
          %s411 = sand.u32 %s117, 1
          %s412 = scalar_lea.sflag [#allocation5], %s411
          %s413 = sand.u32 %s117, 1
          %s414 = smul.addr %s413, 32
          %s415 = scalar_lea.vmem [#allocation8], %s414
          %416 = dma.done %s412, 512
        $region60: #{tpu_custom_call.1} parent=55 // pred_fallthru
          _
      $region56: #{tpu_custom_call.1} parent=5 // pred_fallthru
        _
    $region6: #{tpu_custom_call.1} parent=1 // loop_footer
      %s20 = sadd.s32 1, %s16
    $region7: #{tpu_custom_call.1} parent=1 // loop_footer_branch
      %15 = sbr.rel target = $region3
    $region8: #{tpu_custom_call.1} parent=1 // loop_exit
      _
    %417 = vsyncpa [#allocation4], 1
    %s418 = scalar_lea.sflag [#allocation4], 1
    %419 = vsyncpa %s418, 1
    %420 = vsyncpa [#allocation7], 1
    %421 = vsyncpa [#allocation5], 1
    %s422 = scalar_lea.sflag [#allocation5], 1
    %423 = vsyncpa %s422, 1

</llo_original>
